<compile_context>
chip_gen: v5e
topology: v5e:2x2
jax: 0.10.0
libtpu: 0.0.40
codegen_flags: <defaults>
</compile_context>

<pallas_src>
import math
import functools

import jax
import jax.numpy as jnp
from jax import lax
from jax.experimental import pallas as pl
from jax.experimental.pallas import tpu as pltpu


def _cdiv(a, b):
    return (a + b - 1) // b


def _round_up(n, m):
    return ((n + m - 1) // m) * m


# -----------------------------------------------------------------------------
# mask=None fast path: batch-invariant lane-packed sin/cos table.
# -----------------------------------------------------------------------------
def _sine_table_kernel(slope_ref, bias_ref, out_ref, *, tile_rows):
    """out[r, q] = sin(row_global(r) * slope[q] + bias[q]).

    out_ref: (tile_rows, W) with W = group * num_pos_feats (lane-dense).
    Row r covers `group` consecutive sequence positions; lane q carries feature
    (q % P) of position group*r + q//P.  slope/bias are (1, W) lane constants
    with the normalize factor, the "+1", the group offset and the sin/cos phase
    already folded in, so per-element work is one mul + one add + one sin.
    """
    r0 = pl.program_id(0) * tile_rows
    tr, _ = out_ref.shape
    row = lax.broadcasted_iota(jnp.int32, (tr, 1), 0) + r0          # narrow (tR, 1)
    angle = row.astype(jnp.float32) * slope_ref[...] + bias_ref[...]  # (tR, W)
    out_ref[...] = jnp.sin(angle)


# -----------------------------------------------------------------------------
# masked path: embed (already cumsum'd / normalized) -> sin/cos embedding.
# -----------------------------------------------------------------------------
def _sine_embed_kernel(embed_ref, inv_ref, phase_ref, out_ref):
    p = out_ref.shape[-1]
    angle = (embed_ref[...][:, :, None] * inv_ref[...].reshape(1, 1, p)
             + phase_ref[...].reshape(1, 1, p))
    out_ref[...] = jnp.sin(angle)


def position_embedding_sine(x, mask=None, *, num_pos_feats=64, temperature=10000,
                            normalize=False, scale=None):
    if scale is not None and normalize is False:
        raise ValueError("normalize should be True if scale is passed")
    if scale is None:
        scale = 2 * math.pi

    B, L = int(x.shape[0]), int(x.shape[1])
    P = int(num_pos_feats)

    # 1/dim_t and the per-feature phase (0 -> sin, pi/2 -> cos(x) = sin(x + pi/2)).
    k = jnp.arange(P, dtype=jnp.float32)
    dim_t = jnp.float32(temperature) ** (2.0 * jnp.floor(k / 2.0) / jnp.float32(P))
    inv_dim_t = (1.0 / dim_t).astype(jnp.float32)
    phase = jnp.where(jnp.arange(P) % 2 == 0, 0.0, math.pi / 2.0).astype(jnp.float32)

    if mask is None:
        # -------- batch-invariant table: compute once, broadcast over batch --------
        group = (128 // P) if (P < 128 and 128 % P == 0) else 1
        W = group * P
        R = _cdiv(L, group)                      # packed rows needed (pre-padding)

        norm_mult = jnp.float32(scale / (L + 1e-6)) if normalize else jnp.float32(1.0)
        # angle(r, q) = r * slope[q] + bias[q]
        #   slope[q] = group * norm_mult / dim_t[q % P]
        #   bias[q]  = (q // P + 1) * norm_mult / dim_t[q % P] + phase[q % P]
        slope = jnp.tile(jnp.float32(group) * norm_mult * inv_dim_t, group).reshape(1, W)
        bias = jnp.concatenate(
            [jnp.float32(g + 1) * norm_mult * inv_dim_t + phase for g in range(group)]
        ).reshape(1, W)

        # ~4 MiB output blocks (8 MiB double-buffered: fits all generations' scoped
        # VMEM defaults); keep >= 2 grid steps when there is enough work (v7x megacore).
        target_bytes = 4 * 1024 * 1024
        tR = max(8, (target_bytes // (4 * W)) // 8 * 8)
        if tR >= R:
            tR = _round_up(_cdiv(R, 2), 8) if R >= 128 else _round_up(R, 8)
        R_pad = _round_up(R, tR)
        grid = (R_pad // tR,)

        kernel = functools.partial(_sine_table_kernel, tile_rows=tR)
        table = pl.pallas_call(
            kernel,
            out_shape=jax.ShapeDtypeStruct((R_pad, W), jnp.float32),
            grid=grid,
            in_specs=[pl.BlockSpec((1, W), lambda r: (0, 0)),
                      pl.BlockSpec((1, W), lambda r: (0, 0))],
            out_specs=pl.BlockSpec((tR, W), lambda r: (r, 0)),
            compiler_params=pltpu.CompilerParams(dimension_semantics=("parallel",)),
            cost_estimate=pl.CostEstimate(flops=3 * R_pad * W,
                                          transcendentals=R_pad * W,
                                          bytes_accessed=4 * (R_pad * W + 2 * W)),
        )(slope, bias)

        table = table.reshape(R_pad * group, P)[:L]          # (L, P), drop padded rows
        return jnp.broadcast_to(table[None], (B, L, P))

    # -------- masked path: O(B*L) cumsum/normalization in XLA, heavy part in Pallas --------
    not_mask = jnp.logical_not(mask).astype(jnp.float32)
    embed = jnp.cumsum(not_mask, axis=1)
    if normalize:
        eps = 1e-6
        embed = embed * (scale / (embed[:, -1:] + eps))   # reciprocal-multiply

    out_bytes = 4 * B * L * P
    if out_bytes <= (1 << 19):
        # small problem: single block (block dims equal full array dims -> always legal)
        tL, L_pad = L, L
        grid = (1,)
    else:
        target_bytes = 4 * 1024 * 1024
        tL = max(128, (target_bytes // (4 * B * P)) // 128 * 128)
        if tL >= L:
            tL = max(128, _round_up(_cdiv(L, 2), 128))    # keep >= 2 grid steps (v7x)
        L_pad = _round_up(L, tL)
        grid = (L_pad // tL,)
        if L_pad != L:
            embed = jnp.pad(embed, ((0, 0), (0, L_pad - L)))

    out = pl.pallas_call(
        _sine_embed_kernel,
        out_shape=jax.ShapeDtypeStruct((B, L_pad, P), jnp.float32),
        grid=grid,
        in_specs=[pl.BlockSpec((B, tL), lambda i: (0, i)),
                  pl.BlockSpec((1, P), lambda i: (0, 0)),
                  pl.BlockSpec((1, P), lambda i: (0, 0))],
        out_specs=pl.BlockSpec((B, tL, P), lambda i: (0, i, 0)),
        compiler_params=pltpu.CompilerParams(dimension_semantics=("parallel",)),
        cost_estimate=pl.CostEstimate(flops=2 * B * L_pad * P,
                                      transcendentals=B * L_pad * P,
                                      bytes_accessed=4 * (B * L_pad + 2 * P + B * L_pad * P)),
    )(embed, inv_dim_t.reshape(1, P), phase.reshape(1, P))
    return out[:, :L] if L_pad != L else out


def _reference(not_mask, num_pos_feats, temperature, normalize, scale):
    """Pure-JAX mirror of the PyTorch module."""
    embed = jnp.cumsum(not_mask, axis=1)
    if normalize:
        eps = 1e-6
        embed = embed / (embed[:, -1:] + eps) * scale
    dim_t = jnp.arange(num_pos_feats, dtype=jnp.float32)
    dim_t = temperature ** (2.0 * jnp.floor(dim_t / 2.0) / num_pos_feats)
    pos = embed[:, :, None] / dim_t
    pos = jnp.stack((jnp.sin(pos[:, :, 0::2]), jnp.cos(pos[:, :, 1::2])), axis=3)
    return pos.reshape(embed.shape[0], embed.shape[1], -1)


if __name__ == "__main__":
    key = jax.random.PRNGKey(0)
    B, L, D = 2, 16, 32
    P = 64

    x = jax.random.normal(key, (B, L, D), dtype=jnp.float32)
    ones = jnp.ones((B, L), jnp.float32)

    # 1) default: mask=None, normalize=False  (batch-invariant lane-packed table)
    out = jax.block_until_ready(position_embedding_sine(x, num_pos_feats=P))
    ref = _reference(ones, P, 10000, False, 2 * math.pi)
    assert out.shape == (B, L, P)
    assert jnp.allclose(out, ref, atol=2e-5, rtol=2e-5)

    # 2) mask=None, normalize=True
    out_n = jax.block_until_ready(
        position_embedding_sine(x, num_pos_feats=P, normalize=True))
    ref_n = _reference(ones, P, 10000, True, 2 * math.pi)
    assert jnp.allclose(out_n, ref_n, atol=2e-5, rtol=2e-5)

    # 3) explicit padding mask, normalize=True  (masked path, single block)
    lengths = jnp.array([16, 11])
    mask = jnp.arange(L)[None, :] >= lengths[:, None]
    out_m = jax.block_until_ready(
        position_embedding_sine(x, mask, num_pos_feats=P, normalize=True))
    ref_m = _reference(jnp.logical_not(mask).astype(jnp.float32), P, 10000, True,
                       2 * math.pi)
    assert jnp.allclose(out_m, ref_m, atol=2e-5, rtol=2e-5)

    # 4) mask=None, L not a multiple of the packing group -> row padding + 2 grid steps
    L2 = 300
    x2 = jax.random.normal(key, (B, L2, D), dtype=jnp.float32)
    out2 = jax.block_until_ready(
        position_embedding_sine(x2, num_pos_feats=P, normalize=True))
    ref2 = _reference(jnp.ones((B, L2), jnp.float32), P, 10000, True, 2 * math.pi)
    assert out2.shape == (B, L2, P)
    assert jnp.allclose(out2, ref2, atol=2e-5, rtol=2e-5)

    # 5) masked path, tiled + padded (L not a multiple of the tile)
    L3 = 1100
    x3 = jax.random.normal(key, (B, L3, D), dtype=jnp.float32)
    lengths3 = jnp.array([1100, 700])
    mask3 = jnp.arange(L3)[None, :] >= lengths3[:, None]
    out3 = jax.block_until_ready(
        position_embedding_sine(x3, mask3, num_pos_feats=P, normalize=True))
    ref3 = _reference(jnp.logical_not(mask3).astype(jnp.float32), P, 10000, True,
                      2 * math.pi)
    assert out3.shape == (B, L3, P)
    assert jnp.allclose(out3, ref3, atol=2e-5, rtol=2e-5)

    print("KERNEL_OK")
</pallas_src>

<mosaic_0001>
module attributes {stable_mosaic.version = 11 : i64} {
  func.func @_sine_table_kernel(%arg0: i32, %arg1: memref<1x128xf32, #tpu.memory_space<vmem>>, %arg2: memref<1x128xf32, #tpu.memory_space<vmem>>, %arg3: memref<8x128xf32, #tpu.memory_space<vmem>>) attributes {dimension_semantics = [#tpu.dimension_semantics<parallel>], iteration_bounds = array<i64: 1>, scalar_prefetch = 0 : i64, scratch_operands = 0 : i64, tpu.core_type = #tpu.core_type<tc>, window_params = [{pipeline_mode = #tpu.pipeline_mode<synchronous>, transform_indices = @transform_0, window_bounds = array<i64: 1, 128>}, {pipeline_mode = #tpu.pipeline_mode<synchronous>, transform_indices = @transform_1, window_bounds = array<i64: 1, 128>}, {transform_indices = @transform_2, window_bounds = array<i64: 8, 128>}]} {
    %c8_i32 = arith.constant 8 : i32
    %0 = arith.muli %arg0, %c8_i32 : i32
    %1 = tpu.iota {dimensions = array<i32: 0>} : vector<8x1xi32>
    %2 = vector.broadcast %0 : i32 to vector<8x1xi32>
    %3 = arith.addi %1, %2 : vector<8x1xi32>
    %4 = arith.sitofp %3 : vector<8x1xi32> to vector<8x1xf32>
    %c0 = arith.constant 0 : index
    %c0_0 = arith.constant 0 : index
    %5 = vector.load %arg1[%c0, %c0_0] : memref<1x128xf32, #tpu.memory_space<vmem>>, vector<1x128xf32>
    %6 = vector.broadcast %4 : vector<8x1xf32> to vector<8x128xf32>
    %7 = vector.broadcast %5 : vector<1x128xf32> to vector<8x128xf32>
    %8 = arith.mulf %6, %7 : vector<8x128xf32>
    %c0_1 = arith.constant 0 : index
    %c0_2 = arith.constant 0 : index
    %9 = vector.load %arg2[%c0_1, %c0_2] : memref<1x128xf32, #tpu.memory_space<vmem>>, vector<1x128xf32>
    %10 = vector.broadcast %9 : vector<1x128xf32> to vector<8x128xf32>
    %11 = arith.addf %8, %10 : vector<8x128xf32>
    %12 = math.sin %11 : vector<8x128xf32>
    %c0_3 = arith.constant 0 : index
    %c0_4 = arith.constant 0 : index
    %13 = vector.load %arg3[%c0_3, %c0_4] : memref<8x128xf32, #tpu.memory_space<vmem>>, vector<8x128xf32>
    tpu.vector_store %arg3[%c0_3, %c0_4], %12 {strides = array<i32>} : memref<8x128xf32, #tpu.memory_space<vmem>>, vector<8x128xf32>,
    return
  }
  func.func @transform_0(%arg0: i32) -> (i32, i32) {
    %c0_i32 = arith.constant 0 : i32
    %c0_i32_0 = arith.constant 0 : i32
    %c0_i32_1 = arith.constant 0 : i32
    return %c0_i32, %c0_i32_0 : i32, i32
  }
  func.func @transform_1(%arg0: i32) -> (i32, i32) {
    %c0_i32 = arith.constant 0 : i32
    %c0_i32_0 = arith.constant 0 : i32
    %c0_i32_1 = arith.constant 0 : i32
    return %c0_i32, %c0_i32_0 : i32, i32
  }
  func.func @transform_2(%arg0: i32) -> (i32, i32) {
    %c0_i32 = arith.constant 0 : i32
    %c0_i32_0 = arith.constant 0 : i32
    return %arg0, %c0_i32 : i32, i32
  }
}

</mosaic_0001>

<llo_original>
// kernel: tpu_custom_call.1
$region0: #{tpu_custom_call.1}
  #allocation0 [shape = 'u32[]', space=smem, size = 0x4, offset = 0x4, fixed_abs, tag = 'smem constant byte address 0x4 - core index']
  #allocation1 [shape = 'u32[72,128]{1,0:T(1,128)}', space=vmem, size = 0x9000, scoped, tag = 'internal scratch']
  %s0 = inlined_call_operand.hbm [shape: f32[1,128], index: 0, kind: input, shape index: {}]
  %s1 = inlined_call_operand.hbm [shape: f32[1,128], index: 1, kind: input, shape index: {}]
  %s2 = inlined_call_operand.hbm [shape: f32[8,128], index: 2, kind: output, shape index: {}]
  %s3 = sld [smem:[#allocation0]]
  $region26: #{tpu_custom_call.1} parent=0
    _
  %s5 = ssub.s32 1, %s3
  %s6 = scalar_select 0, %s5, %s3
  $region1: #{tpu_custom_call.1} parent=0
    #allocation2 [shape = 'u8[512]{0}', space=vmem, size = 0x400, scoped, tag = 'input window, operand 0, single buffered']
    #allocation3 [shape = 's32[1]{0}', space=sflag, size = 0x4, scoped, tag = 'scoped memory for tpu_custom_call.1']
    #allocation4 [shape = 's32[1]{0}', space=sflag, size = 0x4, scoped, tag = 'scoped memory for tpu_custom_call.1']
    #allocation5 [shape = 'u8[512]{0}', space=vmem, size = 0x400, scoped, tag = 'input window, operand 1, single buffered']
    #allocation6 [shape = 's32[1]{0}', space=sflag, size = 0x4, scoped, tag = 'scoped memory for tpu_custom_call.1']
    #allocation7 [shape = 'u8[4096]{0}', space=vmem, size = 0x1000, scoped, tag = 'output window, operand 0, single buffered']
    %7 = vsyncpa [#allocation3], 0
    %8 = vsyncpa [#allocation6], 0
    %9 = vsyncpa [#allocation4], 0
    // Predicated region
    $region2: #{tpu_custom_call.1} parent=1 // pred_check
      _
    $region3: #{tpu_custom_call.1} parent=1 // pred_check_branch
      %11 = sbr.rel (0) target = $region5
    $region4: #{tpu_custom_call.1} parent=1 // pred_region
      %13 = vsyncadd [#allocation3], 0
      %s15 = sshll.u32 %s0, 4
      %s16 = int_to_ptr.hbm [resolvable:$true] %s15
      %s17 = sshll.u32 [#allocation2], 4
      %s18 = int_to_ptr.vmem [resolvable:$true] %s17
      %20 = dma.hbm_to_vmem [thread:$0]  %s16, 16, %s18, [#allocation3]
    $region5: #{tpu_custom_call.1} parent=1 // pred_fallthru
      _
    // Predicated region
    $region6: #{tpu_custom_call.1} parent=1 // pred_check
      _
    $region7: #{tpu_custom_call.1} parent=1 // pred_check_branch
      %22 = sbr.rel (0) target = $region9
    $region8: #{tpu_custom_call.1} parent=1 // pred_region
      %24 = vsyncadd [#allocation6], 0
      %s26 = sshll.u32 %s1, 4
      %s27 = int_to_ptr.hbm [resolvable:$true] %s26
      %s28 = sshll.u32 [#allocation5], 4
      %s29 = int_to_ptr.vmem [resolvable:$true] %s28
      %31 = dma.hbm_to_vmem [thread:$0]  %s27, 16, %s29, [#allocation6]
    $region9: #{tpu_custom_call.1} parent=1 // pred_fallthru
      _
    // Predicated region
    $region10: #{tpu_custom_call.1} parent=1 // pred_check
      _
    $region11: #{tpu_custom_call.1} parent=1 // pred_check_branch
      %33 = sbr.rel (0) target = $region13
    $region12: #{tpu_custom_call.1} parent=1 // pred_region
      %35 = dma.done [#allocation3], 16
    $region13: #{tpu_custom_call.1} parent=1 // pred_fallthru
      _
    // Predicated region
    $region14: #{tpu_custom_call.1} parent=1 // pred_check
      _
    $region15: #{tpu_custom_call.1} parent=1 // pred_check_branch
      %37 = sbr.rel (0) target = $region17
    $region16: #{tpu_custom_call.1} parent=1 // pred_region
      %39 = dma.done [#allocation6], 16
    $region17: #{tpu_custom_call.1} parent=1 // pred_fallthru
      _
    %s40 = smul.u32 0, 8
    %v41 = vlaneseq
    %v42 = vshrl.u32 %v41, 7
    %v43 = vstv %s40
    %v44 = vadd.s32 %v42, %v43
    %v45 = vcvt.s32.f32 %v44
    %v46 = vld [vmem:[#allocation2] sm:$0x1]
    %v48 = vperm.slane %v46, 0
    %v50 = vmul.f32 %v45, %v48
    %v51 = vld [vmem:[#allocation5] sm:$0x1]
    %v53 = vperm.slane %v51, 0
    %v55 = vadd.f32 %v50, %v53
    %v56 = vand.u32 2147483647, %v55
    %vm57 = vcmp.le.f32.partialorder %v56, 0.7853982
    %vm58 = vcmp.lt.s32.totalorder %v55, 0
    %v59 = vand.u32 %v55, 2139095040
    %v60 = vshrl.u32 %v59, 23
    %v61 = vsub.s32 %v60, 127
    %v62 = vand.u32 2147483647, %v55
    %v63 = vand.u32 %v62, 8388607
    %v64 = vor.u32 %v63, 8388608
    %v65 = vsub.s32 0, %v64
    %v66 = vadd.s32 %v61, 1
    %vm67 = vcmp.gt.s32.totalorder %v66, 0
    %v68 = vsel %vm67, %v66, 0
    %v69 = vshrl.u32 %v68, 5
    %v70 = vand.u32 %v68, 31
    %v71 = vsub.s32 32, %v70
    %v72 = vshrl.u32 683565275, %v71
    %v73 = vshll.u32 683565275, %v70
    %v74 = vshrl.u32 2475754826, %v71
    %v75 = vor.u32 %v73, %v74
    %v76 = vshll.u32 2475754826, %v70
    %v77 = vshrl.u32 2131351028, %v71
    %v78 = vor.u32 %v76, %v77
    %v79 = vshll.u32 2131351028, %v70
    %v80 = vshrl.u32 2102212464, %v71
    %v81 = vor.u32 %v79, %v80
    %v82 = vshll.u32 2102212464, %v70
    %v83 = vshrl.u32 920167782, %v71
    %v84 = vor.u32 %v82, %v83
    %v85 = vshll.u32 920167782, %v70
    %v86 = vshrl.u32 1326507024, %v71
    %v87 = vor.u32 %v85, %v86
    %vm88 = vcmp.lt.s32.totalorder %v69, 1
    %vm89 = vcmp.lt.s32.totalorder %v69, 2
    %vm90 = vcmp.lt.s32.totalorder %v69, 3
    %vm91 = vcmp.lt.s32.totalorder %v69, 4
    %v92 = vsel %vm88, %v72, %v75
    %v93 = vsel %vm91, %v81, 2102212464
    %v94 = vsel %vm90, %v78, %v93
    %v95 = vsel %vm89, %v92, %v94
    %v96 = vsel %vm88, %v75, %v78
    %v97 = vsel %vm91, %v84, 920167782
    %v98 = vsel %vm90, %v81, %v97
    %v99 = vsel %vm89, %v96, %v98
    %v100 = vsel %vm88, %v78, %v81
    %v101 = vsel %vm91, %v87, 1326507024
    %v102 = vsel %vm90, %v84, %v101
    %v103 = vsel %vm89, %v100, %v102
    %v104 = vshll.u32 %v64, 8
    %v105 = vand.u32 %v104, 65535
    %v106 = vshrl.u32 %v104, 16
    %v107 = vand.u32 %v103, 65535
    %v108 = vshrl.u32 %v103, 16
    %v109 = vmul.u32 %v105, %v107
    %v110 = vmul.u32 %v105, %v108
    %v111 = vmul.u32 %v106, %v107
    %v112 = vmul.u32 %v106, %v108
    %v113 = vshll.u32 %v110, 16
    %v114 = vshrl.u32 %v110, 16
    %v115 = vshll.u32 %v111, 16
    %v116 = vshrl.u32 %v111, 16
    %vm117 = vc.u32 %v109, %v113
    %v118 = vsel %vm117, 1, 0
    %v119 = vadd.s32 %v109, %v113
    %v120 = vadd.s32 %v112, %v118
    %vm121 = vc.u32 %v119, %v115
    %v122 = vsel %vm121, 1, 0
    %v123 = vadd.s32 %v119, %v115
    %v124 = vadd.s32 %v120, %v122
    %v125 = vadd.s32 %v124, %v114
    %v126 = vadd.s32 %v125, %v116
    %v127 = vand.u32 %v104, 65535
    %v128 = vshrl.u32 %v104, 16
    %v129 = vand.u32 %v99, 65535
    %v130 = vshrl.u32 %v99, 16
    %v131 = vmul.u32 %v127, %v129
    %v132 = vmul.u32 %v127, %v130
    %v133 = vmul.u32 %v128, %v129
    %v134 = vmul.u32 %v128, %v130
    %v135 = vshll.u32 %v132, 16
    %v136 = vshrl.u32 %v132, 16
    %v137 = vshll.u32 %v133, 16
    %v138 = vshrl.u32 %v133, 16
    %vm139 = vc.u32 %v131, %v135
    %v140 = vsel %vm139, 1, 0
    %v141 = vadd.s32 %v131, %v135
    %v142 = vadd.s32 %v134, %v140
    %vm143 = vc.u32 %v141, %v137
    %v144 = vsel %vm143, 1, 0
    %v145 = vadd.s32 %v141, %v137
    %v146 = vadd.s32 %v142, %v144
    %v147 = vadd.s32 %v146, %v136
    %v148 = vadd.s32 %v147, %v138
    %v149 = vmul.u32 %v104, %v95
    %v150 = vadd.s32 %v126, %v145
    %vm151 = vc.u32 %v126, %v145
    %v152 = vadd.s32 %v148, 1
    %v153 = vsel %vm151, %v152, %v148
    %v154 = vadd.s32 %v149, %v153
    %v155 = vadd.s32 %v154, 536870912
    %v156 = vshrl.u32 %v155, 30
    %v157 = vshll.u32 %v156, 30
    %v158 = vsub.s32 %v154, %v157
    %vm159 = vcmp.lt.s32.totalorder %v158, 0
    %v160 = vsub.s32 0, %v158
    %v161 = vsel %vm159, %v160, %v158
    %v162 = vclz %v161
    %v163 = vsub.s32 %v162, 2
    %vm164 = vcmp.gt.s32.totalorder 0, %v163
    %v165 = vsel %vm164, 0, %v163
    %v166 = vsub.s32 32, %v165
    %v167 = vshll.u32 %v158, %v165
    %v168 = vshrl.u32 %v150, %v166
    %v169 = vor.u32 %v167, %v168
    %v170 = vsub.s32 4294967266, %v165
    %v171 = vadd.s32 %v170, 127
    %v172 = vshll.u32 %v171, 23
    %v173 = vor.u32 4788187, %v172
    %v174 = vand.u32 2147483647, %v173
    %v176 = vcvt.s32.f32 %v169
    %v177 = vmul.f32 %v176, %v174
    %v178 = vxor.u32 %v177, 2147483648
    %v179 = vsel %vm58, %v178, %v177
    %v180 = vsub.s32 4, %v156
    %v181 = vsel %vm58, %v180, %v156
    %v182 = vsel %vm57, %v55, %v179
    %v183 = vsel %vm57, 0, %v181
    %v184 = vmul.f32 %v182, %v182
    %v185 = vmul.f32 %v184, -0.001358992
    %v186 = vadd.f32 %v185, 0.041655596
    %v187 = vmul.f32 %v184, %v186
    %v188 = vadd.f32 %v187, -0.4999988
    %v189 = vmul.f32 %v184, %v188
    %v190 = vadd.f32 1.0, %v189
    %v191 = vmul.f32 %v182, %v182
    %v192 = vmul.f32 %v191, -0.00019511016
    %v193 = vadd.f32 %v192, 0.008332121
    %v194 = vmul.f32 %v191, %v193
    %v195 = vadd.f32 %v194, -0.16666654
    %v196 = vmul.f32 %v191, %v195
    %v197 = vadd.f32 %v196, 1.0
    %v198 = vmul.f32 %v197, %v182
    %vm199 = vweird.f32 %v55
    %v200 = vadd.s32 %v183, 3
    %v201 = vand.u32 %v200, 3
    %vm202 = vcmp.lt.s32.totalorder %v201, 2
    %vm203 = vcmp.eq.s32.totalorder %v201, 0
    %v204 = vxor.u32 %v198, 2147483648
    %v205 = vsel %vm203, %v190, %v204
    %vm206 = vcmp.eq.s32.totalorder %v201, 2
    %v207 = vxor.u32 %v190, 2147483648
    %v208 = vsel %vm206, %v207, %v198
    %v209 = vsel %vm202, %v205, %v208
    %v210 = vsel %vm199, nan, %v209
    %211 = vst [vmem:[#allocation7] sm:$0xff] %v210
    // Predicated region
    $region18: #{tpu_custom_call.1} parent=1 // pred_check
      _
    $region19: #{tpu_custom_call.1} parent=1 // pred_check_branch
      %213 = sbr.rel (0) target = $region21
    $region20: #{tpu_custom_call.1} parent=1 // pred_region
      %215 = vsyncadd [#allocation4], 0
      %s217 = sshll.u32 [#allocation7], 4
      %s218 = int_to_ptr.vmem [resolvable:$true] %s217
      %s219 = sshll.u32 %s2, 4
      %s220 = int_to_ptr.hbm [resolvable:$true] %s219
      %222 = dma.vmem_to_hbm [thread:$0]  %s218, 128, %s220, [#allocation4]
    $region21: #{tpu_custom_call.1} parent=1 // pred_fallthru
      _
    // Predicated region
    $region22: #{tpu_custom_call.1} parent=1 // pred_check
      _
    $region23: #{tpu_custom_call.1} parent=1 // pred_check_branch
      %224 = sbr.rel (0) target = $region25
    $region24: #{tpu_custom_call.1} parent=1 // pred_region
      %226 = dma.done [#allocation4], 128
    $region25: #{tpu_custom_call.1} parent=1 // pred_fallthru
      _
    %227 = vsyncpa [#allocation3], 1
    %228 = vsyncpa [#allocation6], 1
    %229 = vsyncpa [#allocation4], 1

</llo_original>
